<compile_context>
chip_gen: v6e
topology: v6e:2x2x1
jax: 0.10.0
libtpu: 0.0.40
codegen_flags: <defaults>
</compile_context>

<pallas_src>
import functools

import numpy as np
import jax
import jax.numpy as jnp
from jax.experimental import pallas as pl
from jax.experimental.pallas import tpu as pltpu


def _round_up(x, m):
    return ((x + m - 1) // m) * m


def _logspecgram_kernel(x_ref, basis_ref, interp_ref, o_ref, *, nu, amin):
    # x_ref:      [tile_m, n_fft]    rows are flattened (batch, frame) pairs
    # basis_ref:  [n_fft, 2*nu]      [hann*cos | hann*sin], nu a multiple of 128
    # interp_ref: [nu, fb_pad]       sparse log-frequency interpolation matrix
    # o_ref:      [tile_m, fb_pad]   un-clamped dB output
    x = x_ref[...].astype(basis_ref.dtype)
    ri = jnp.dot(x, basis_ref[...], preferred_element_type=jnp.float32)
    real = ri[:, :nu]                     # 128-aligned slice: no relayout
    imag = ri[:, nu:]
    power = real * real + imag * imag     # |rfft|^2 on the used band, f32
    logspec = jnp.dot(power.astype(interp_ref.dtype), interp_ref[...],
                      preferred_element_type=jnp.float32)
    db = 10.0 * jnp.log10(jnp.maximum(logspec, amin))
    o_ref[...] = db.astype(o_ref.dtype)


def make_params(sample_rate, n_fft, fmin, bins_per_octave, freq_bins,
                basis_dtype=jnp.float32):
    """Deterministically build the module's buffers as two matmul operands."""
    # Periodic Hann window -- matches torch.hann_window(n_fft) defaults.
    n = np.arange(n_fft)
    window = 0.5 * (1.0 - np.cos(2.0 * np.pi * n / n_fft))

    # Log-frequency gather + linear interpolation indices/weights.
    fre_resolution = sample_rate / n_fft
    idxs = np.arange(freq_bins)
    log_idxs = fmin * 2.0 ** (idxs / bins_per_octave) / fre_resolution
    floor = np.floor(log_idxs).astype(np.int64)
    ceil = np.ceil(log_idxs).astype(np.int64)
    # NOTE: weights deliberately replicate harmof0's original code (floor gets
    # (x - floor), ceil gets (ceil - x), i.e. swapped vs. textbook lerp; the
    # floor == ceil corner case zeroes that bin), to keep the module's semantics.
    floor_w = log_idxs - floor
    ceil_w = ceil - log_idxs
    assert ceil.max() < n_fft // 2 + 1, "log-frequency indices exceed rfft bins"

    # Only DFT bins [0, nu_used) feed the interpolation: truncate the basis to that
    # band, rounded up to a lane-dense multiple of 128.
    nu_used = int(ceil.max()) + 1
    nu = min(_round_up(nu_used, 128), n_fft)

    k = np.arange(n_fft)[:, None]                    # sample index within a frame
    f = np.arange(nu)[None, :]                       # DFT bin
    ang = 2.0 * np.pi * ((k * f) % n_fft) / n_fft    # reduce mod n_fft before trig
    cos_mat = np.cos(ang) * window[:, None]          # Hann folded into the basis
    sin_mat = np.sin(ang) * window[:, None]          # sign irrelevant: power only
    basis = np.concatenate([cos_mat, sin_mat], axis=1)   # [n_fft, 2*nu]

    fb_pad = _round_up(freq_bins, 128)               # lane-dense output stores
    interp = np.zeros((nu, fb_pad), dtype=np.float64)
    np.add.at(interp, (floor, idxs), floor_w)
    np.add.at(interp, (ceil, idxs), ceil_w)

    return jnp.asarray(basis, basis_dtype), jnp.asarray(interp, basis_dtype)


def waveform_to_logspecgram(waveforms, basis, interp, *, freq_bins,
                            top_db=80.0, amin=1e-10, tile_m=256):
    B, T, n_fft = waveforms.shape
    two_nu = basis.shape[1]
    nu = two_nu // 2
    fb_pad = interp.shape[1]
    assert basis.shape[0] == n_fft and interp.shape[0] == nu

    # Flatten batch*frames into the matmul M dimension and tile it.
    M = B * T
    tile_m = max(8, min(tile_m, _round_up(M, 8)))
    m_pad = _round_up(M, tile_m)
    x = waveforms.reshape(M, n_fft)
    if m_pad != M:
        x = jnp.pad(x, ((0, m_pad - M), (0, 0)))

    kernel = functools.partial(_logspecgram_kernel, nu=nu, amin=amin)
    # TODO(synk): on v7x the grid-invariant basis/interp blocks could additionally be
    # single-buffered (pipeline_mode=pl.Buffered(1)) to halve their VMEM footprint.
    db = pl.pallas_call(
        kernel,
        out_shape=jax.ShapeDtypeStruct((m_pad, fb_pad), jnp.float32),
        grid_spec=pltpu.PrefetchScalarGridSpec(
            num_scalar_prefetch=0,
            grid=(m_pad // tile_m,),
            in_specs=[
                pl.BlockSpec((tile_m, n_fft), lambda i: (i, 0)),
                pl.BlockSpec((n_fft, two_nu), lambda i: (0, 0)),
                pl.BlockSpec((nu, fb_pad), lambda i: (0, 0)),
            ],
            out_specs=pl.BlockSpec((tile_m, fb_pad), lambda i: (i, 0)),
        ),
        compiler_params=pltpu.CompilerParams(
            dimension_semantics=("parallel",),
            vmem_limit_bytes=48 * 1024 * 1024,
        ),
    )(x, basis, interp)

    db = db[:M, :freq_bins].reshape(B, T, freq_bins)
    # torchaudio AmplitudeToDB(top_db) with a 3-D input clamps against the GLOBAL max
    # of the whole tensor.  That needs a reduction across all grid tiles, so it is a
    # one-line XLA epilogue here; this stays exact under any M tiling / core split.
    return jnp.maximum(db, jnp.max(db) - top_db)


if __name__ == "__main__":
    # harmof0-style config at small batch/frame counts.
    sample_rate = 16000
    n_fft = 512
    fmin = 27.5
    bins_per_octave = 48
    freq_bins = 352            # 88 piano keys * 4 bins/semitone
    B, T = 2, 8

    basis, interp = make_params(sample_rate, n_fft, fmin, bins_per_octave, freq_bins)

    key = jax.random.PRNGKey(0)
    waveforms = jax.random.normal(key, (B, T, n_fft), dtype=jnp.float32)

    out = waveform_to_logspecgram(waveforms, basis, interp, freq_bins=freq_bins)
    out = jax.block_until_ready(out)
    assert out.shape == (B, T, freq_bins)
    assert bool(jnp.all(jnp.isfinite(out)))

    # float64 numpy replica of the PyTorch forward (torch.fft.fft path + harmof0
    # interpolation + AmplitudeToDB).  Robust (median/mean) comparison: TPU MXU
    # matmuls may execute f32 at reduced internal precision, which can perturb
    # isolated near-null spectral bins well beyond the typical ~1e-2 dB error.
    wf = np.asarray(waveforms, dtype=np.float64)
    win = 0.5 * (1.0 - np.cos(2.0 * np.pi * np.arange(n_fft) / n_fft))
    spec = np.fft.fft(wf * win, axis=-1)[..., : n_fft // 2 + 1]
    p = np.abs(spec) ** 2
    idxs = np.arange(freq_bins)
    log_idxs = fmin * 2.0 ** (idxs / bins_per_octave) / (sample_rate / n_fft)
    fl = np.floor(log_idxs).astype(np.int64)
    ce = np.ceil(log_idxs).astype(np.int64)
    sg = p[..., fl] * (log_idxs - fl) + p[..., ce] * (ce - log_idxs)
    ref = 10.0 * np.log10(np.maximum(sg, 1e-10))
    ref = np.maximum(ref, ref.max() - 80.0)

    err = np.abs(np.asarray(out, dtype=np.float64) - ref)
    assert np.median(err) < 0.1, f"median dB error too large: {np.median(err)}"
    assert np.mean(err) < 0.2, f"mean dB error too large: {np.mean(err)}"
    # AmplitudeToDB clamp property.
    assert float(jnp.min(out)) >= float(jnp.max(out)) - 80.0 - 1e-3

    print("KERNEL_OK")
</pallas_src>

<mosaic_0001>
module attributes {stable_mosaic.version = 11 : i64} {
  func.func @_logspecgram_kernel(%arg0: i32, %arg1: memref<16x512xf32, #tpu.memory_space<vmem>>, %arg2: memref<512x512xf32, #tpu.memory_space<vmem>>, %arg3: memref<256x384xf32, #tpu.memory_space<vmem>>, %arg4: memref<16x384xf32, #tpu.memory_space<vmem>>) attributes {dimension_semantics = [#tpu.dimension_semantics<parallel>], iteration_bounds = array<i64: 1>, scalar_prefetch = 0 : i64, scratch_operands = 0 : i64, tpu.core_type = #tpu.core_type<tc>, window_params = [{transform_indices = @transform_0, window_bounds = array<i64: 16, 512>}, {pipeline_mode = #tpu.pipeline_mode<synchronous>, transform_indices = @transform_1, window_bounds = array<i64: 512, 512>}, {pipeline_mode = #tpu.pipeline_mode<synchronous>, transform_indices = @transform_2, window_bounds = array<i64: 256, 384>}, {transform_indices = @transform_3, window_bounds = array<i64: 16, 384>}]} {
    %c0 = arith.constant 0 : index
    %c0_0 = arith.constant 0 : index
    %0 = vector.load %arg1[%c0, %c0_0] : memref<16x512xf32, #tpu.memory_space<vmem>>, vector<16x512xf32>
    %c0_1 = arith.constant 0 : index
    %c0_2 = arith.constant 0 : index
    %1 = vector.load %arg2[%c0_1, %c0_2] : memref<512x512xf32, #tpu.memory_space<vmem>>, vector<512x512xf32>
    %cst = arith.constant dense<0.000000e+00> : vector<16x512xf32>
    %2 = tpu.matmul %0, %1, %cst {dimension_numbers = #tpu.dot_dimension_numbers<[1], [0], [0], [1], [0, 0, 1, 1], [], []>} : vector<16x512xf32>, vector<512x512xf32>, vector<16x512xf32> -> vector<16x512xf32>
    %3 = vector.extract_strided_slice %2 {offsets = [0, 0], sizes = [16, 256], strides = [1, 1]} : vector<16x512xf32> to vector<16x256xf32>
    %4 = vector.extract_strided_slice %2 {offsets = [0, 256], sizes = [16, 256], strides = [1, 1]} : vector<16x512xf32> to vector<16x256xf32>
    %5 = arith.mulf %3, %3 : vector<16x256xf32>
    %6 = arith.mulf %4, %4 : vector<16x256xf32>
    %7 = arith.addf %5, %6 : vector<16x256xf32>
    %c0_3 = arith.constant 0 : index
    %c0_4 = arith.constant 0 : index
    %8 = vector.load %arg3[%c0_3, %c0_4] : memref<256x384xf32, #tpu.memory_space<vmem>>, vector<256x384xf32>
    %cst_5 = arith.constant dense<0.000000e+00> : vector<16x384xf32>
    %9 = tpu.matmul %7, %8, %cst_5 {dimension_numbers = #tpu.dot_dimension_numbers<[1], [0], [0], [1], [0, 0, 1, 1], [], []>} : vector<16x256xf32>, vector<256x384xf32>, vector<16x384xf32> -> vector<16x384xf32>
    %cst_6 = arith.constant 1.000000e-10 : f32
    %10 = vector.broadcast %cst_6 : f32 to vector<16x384xf32>
    %11 = arith.maximumf %9, %10 : vector<16x384xf32>
    %12 = math.log %11 : vector<16x384xf32>
    %cst_7 = arith.constant 0.434294492 : f32
    %13 = vector.broadcast %cst_7 : f32 to vector<16x384xf32>
    %14 = arith.mulf %12, %13 : vector<16x384xf32>
    %cst_8 = arith.constant 1.000000e+01 : f32
    %15 = vector.broadcast %cst_8 : f32 to vector<16x384xf32>
    %16 = arith.mulf %15, %14 : vector<16x384xf32>
    %c0_9 = arith.constant 0 : index
    %c0_10 = arith.constant 0 : index
    %17 = vector.load %arg4[%c0_9, %c0_10] : memref<16x384xf32, #tpu.memory_space<vmem>>, vector<16x384xf32>
    tpu.vector_store %arg4[%c0_9, %c0_10], %16 {strides = array<i32>} : memref<16x384xf32, #tpu.memory_space<vmem>>, vector<16x384xf32>,
    return
  }
  func.func @transform_0(%arg0: i32) -> (i32, i32) {
    %c0_i32 = arith.constant 0 : i32
    %c0_i32_0 = arith.constant 0 : i32
    return %arg0, %c0_i32 : i32, i32
  }
  func.func @transform_1(%arg0: i32) -> (i32, i32) {
    %c0_i32 = arith.constant 0 : i32
    %c0_i32_0 = arith.constant 0 : i32
    %c0_i32_1 = arith.constant 0 : i32
    return %c0_i32, %c0_i32_0 : i32, i32
  }
  func.func @transform_2(%arg0: i32) -> (i32, i32) {
    %c0_i32 = arith.constant 0 : i32
    %c0_i32_0 = arith.constant 0 : i32
    %c0_i32_1 = arith.constant 0 : i32
    return %c0_i32, %c0_i32_0 : i32, i32
  }
  func.func @transform_3(%arg0: i32) -> (i32, i32) {
    %c0_i32 = arith.constant 0 : i32
    %c0_i32_0 = arith.constant 0 : i32
    return %arg0, %c0_i32 : i32, i32
  }
}

</mosaic_0001>

<llo_original>
// kernel: tpu_custom_call.1
$region0: #{tpu_custom_call.1}
  #allocation0 [shape = 'u32[]', space=smem, size = 0x4, offset = 0x4, fixed_abs, tag = 'smem constant byte address 0x4 - core index']
  #allocation1 [shape = 'u32[144,128]{1,0:T(1,128)}', space=vmem, size = 0x12000, scoped, tag = 'internal scratch']
  %s0 = inlined_call_operand.hbm [shape: f32[16,512], index: 0, kind: input, shape index: {}]
  %s1 = inlined_call_operand.hbm [shape: f32[512,512], index: 1, kind: input, shape index: {}]
  %s2 = inlined_call_operand.hbm [shape: f32[256,384], index: 2, kind: input, shape index: {}]
  %s3 = inlined_call_operand.hbm [shape: f32[16,384], index: 3, kind: output, shape index: {}]
  %s4 = sld [smem:[#allocation0]]
  $region34: #{tpu_custom_call.1} parent=0
    _
  %s6 = ssub.s32 1, %s4
  %s7 = scalar_select 0, %s6, %s4
  $region1: #{tpu_custom_call.1} parent=0
    #allocation2 [shape = 'u8[32768]{0}', space=vmem, size = 0x8000, scoped, tag = 'input window, operand 0, single buffered']
    #allocation3 [shape = 's32[1]{0}', space=sflag, size = 0x4, scoped, tag = 'scoped memory for tpu_custom_call.1']
    #allocation4 [shape = 's32[1]{0}', space=sflag, size = 0x4, scoped, tag = 'scoped memory for tpu_custom_call.1']
    #allocation5 [shape = 'u8[1048576]{0}', space=vmem, size = 0x100000, scoped, tag = 'input window, operand 1, single buffered']
    #allocation6 [shape = 's32[1]{0}', space=sflag, size = 0x4, scoped, tag = 'scoped memory for tpu_custom_call.1']
    #allocation7 [shape = 'u8[393216]{0}', space=vmem, size = 0x60000, scoped, tag = 'input window, operand 2, single buffered']
    #allocation8 [shape = 'u8[24576]{0}', space=vmem, size = 0x6000, scoped, tag = 'output window, operand 0, single buffered']
    %8 = vsyncpa [#allocation3], 0
    %9 = vsyncpa [#allocation6], 0
    %10 = vsyncpa [#allocation4], 0
    // Predicated region
    $region2: #{tpu_custom_call.1} parent=1 // pred_check
      _
    $region3: #{tpu_custom_call.1} parent=1 // pred_check_branch
      %12 = sbr.rel (0) target = $region5
    $region4: #{tpu_custom_call.1} parent=1 // pred_region
      %s14 = ssub.s32 1024, 1024
      %15 = vsyncadd [#allocation3], %s14
      %s16 = sshll.u32 [#allocation2], 4
      %s17 = int_to_ptr.vmem [resolvable:$true] %s16
      %22 = dma.hbm_to_vmem [thread:$0]  %s0, 1024, %s17, [#allocation3], 512, 512, 32
    $region5: #{tpu_custom_call.1} parent=1 // pred_fallthru
      _
    // Predicated region
    $region6: #{tpu_custom_call.1} parent=1 // pred_check
      _
    $region7: #{tpu_custom_call.1} parent=1 // pred_check_branch
      %24 = sbr.rel (0) target = $region9
    $region8: #{tpu_custom_call.1} parent=1 // pred_region
      %s26 = ssub.s32 32768, 32768
      %27 = vsyncadd [#allocation6], %s26
      %s28 = sshll.u32 [#allocation5], 4
      %s29 = int_to_ptr.vmem [resolvable:$true] %s28
      %34 = dma.hbm_to_vmem [thread:$0]  %s1, 32768, %s29, [#allocation6], 512, 512, 32
    $region9: #{tpu_custom_call.1} parent=1 // pred_fallthru
      _
    // Predicated region
    $region10: #{tpu_custom_call.1} parent=1 // pred_check
      _
    $region11: #{tpu_custom_call.1} parent=1 // pred_check_branch
      %36 = sbr.rel (0) target = $region13
    $region12: #{tpu_custom_call.1} parent=1 // pred_region
      %s38 = ssub.s32 12288, 12288
      %39 = vsyncadd [#allocation6], %s38
      %s40 = sshll.u32 [#allocation7], 4
      %s41 = int_to_ptr.vmem [resolvable:$true] %s40
      %46 = dma.hbm_to_vmem [thread:$0]  %s2, 12288, %s41, [#allocation6], 384, 384, 24
    $region13: #{tpu_custom_call.1} parent=1 // pred_fallthru
      _
    // Predicated region
    $region14: #{tpu_custom_call.1} parent=1 // pred_check
      _
    $region15: #{tpu_custom_call.1} parent=1 // pred_check_branch
      %48 = sbr.rel (0) target = $region17
    $region16: #{tpu_custom_call.1} parent=1 // pred_region
      %49 = dma.done [#allocation3], 1024
    $region17: #{tpu_custom_call.1} parent=1 // pred_fallthru
      _
    // Predicated region
    $region18: #{tpu_custom_call.1} parent=1 // pred_check
      _
    $region19: #{tpu_custom_call.1} parent=1 // pred_check_branch
      %51 = sbr.rel (0) target = $region21
    $region20: #{tpu_custom_call.1} parent=1 // pred_region
      %52 = dma.done [#allocation6], 32768
    $region21: #{tpu_custom_call.1} parent=1 // pred_fallthru
      _
    // Predicated region
    $region22: #{tpu_custom_call.1} parent=1 // pred_check
      _
    $region23: #{tpu_custom_call.1} parent=1 // pred_check_branch
      %54 = sbr.rel (0) target = $region25
    $region24: #{tpu_custom_call.1} parent=1 // pred_region
      %55 = dma.done [#allocation6], 12288
    $region25: #{tpu_custom_call.1} parent=1 // pred_fallthru
      _
    %v56 = vld [vmem:[#allocation2] sm:$0xff]
    %v57 = vld [vmem:[#allocation2 + $0x8] sm:$0xff]
    %v58 = vld [vmem:[#allocation2 + $0x10] sm:$0xff]
    %v59 = vld [vmem:[#allocation2 + $0x18] sm:$0xff]
    %v60 = vld [vmem:[#allocation2 + $0x20] sm:$0xff]
    %v61 = vld [vmem:[#allocation2 + $0x28] sm:$0xff]
    %v62 = vld [vmem:[#allocation2 + $0x30] sm:$0xff]
    %v63 = vld [vmem:[#allocation2 + $0x38] sm:$0xff]
    %v64 = vld [vmem:[#allocation5] sm:$0xff]
    %v65 = vld [vmem:[#allocation5 + $0x8] sm:$0xff]
    %v66 = vld [vmem:[#allocation5 + $0x10] sm:$0xff]
    %v67 = vld [vmem:[#allocation5 + $0x18] sm:$0xff]
    %v68 = vld [vmem:[#allocation5 + $0x20] sm:$0xff]
    %v69 = vld [vmem:[#allocation5 + $0x28] sm:$0xff]
    %v70 = vld [vmem:[#allocation5 + $0x30] sm:$0xff]
    %v71 = vld [vmem:[#allocation5 + $0x38] sm:$0xff]
    %v72 = vld [vmem:[#allocation5 + $0x40] sm:$0xff]
    %v73 = vld [vmem:[#allocation5 + $0x48] sm:$0xff]
    %v74 = vld [vmem:[#allocation5 + $0x50] sm:$0xff]
    %v75 = vld [vmem:[#allocation5 + $0x58] sm:$0xff]
    %v76 = vld [vmem:[#allocation5 + $0x60] sm:$0xff]
    %v77 = vld [vmem:[#allocation5 + $0x68] sm:$0xff]
    %v78 = vld [vmem:[#allocation5 + $0x70] sm:$0xff]
    %v79 = vld [vmem:[#allocation5 + $0x78] sm:$0xff]
    %v80 = vld [vmem:[#allocation5 + $0x80] sm:$0xff]
    %v81 = vld [vmem:[#allocation5 + $0x88] sm:$0xff]
    %v82 = vld [vmem:[#allocation5 + $0x90] sm:$0xff]
    %v83 = vld [vmem:[#allocation5 + $0x98] sm:$0xff]
    %v84 = vld [vmem:[#allocation5 + $0xa0] sm:$0xff]
    %v85 = vld [vmem:[#allocation5 + $0xa8] sm:$0xff]
    %v86 = vld [vmem:[#allocation5 + $0xb0] sm:$0xff]
    %v87 = vld [vmem:[#allocation5 + $0xb8] sm:$0xff]
    %v88 = vld [vmem:[#allocation5 + $0xc0] sm:$0xff]
    %v89 = vld [vmem:[#allocation5 + $0xc8] sm:$0xff]
    %v90 = vld [vmem:[#allocation5 + $0xd0] sm:$0xff]
    %v91 = vld [vmem:[#allocation5 + $0xd8] sm:$0xff]
    %v92 = vld [vmem:[#allocation5 + $0xe0] sm:$0xff]
    %v93 = vld [vmem:[#allocation5 + $0xe8] sm:$0xff]
    %v94 = vld [vmem:[#allocation5 + $0xf0] sm:$0xff]
    %v95 = vld [vmem:[#allocation5 + $0xf8] sm:$0xff]
    %v96 = vld [vmem:[#allocation5 + $0x100] sm:$0xff]
    %v97 = vld [vmem:[#allocation5 + $0x108] sm:$0xff]
    %v98 = vld [vmem:[#allocation5 + $0x110] sm:$0xff]
    %v99 = vld [vmem:[#allocation5 + $0x118] sm:$0xff]
    %v100 = vld [vmem:[#allocation5 + $0x120] sm:$0xff]
    %v101 = vld [vmem:[#allocation5 + $0x128] sm:$0xff]
    %v102 = vld [vmem:[#allocation5 + $0x130] sm:$0xff]
    %v103 = vld [vmem:[#allocation5 + $0x138] sm:$0xff]
    %v104 = vld [vmem:[#allocation5 + $0x140] sm:$0xff]
    %v105 = vld [vmem:[#allocation5 + $0x148] sm:$0xff]
    %v106 = vld [vmem:[#allocation5 + $0x150] sm:$0xff]
    %v107 = vld [vmem:[#allocation5 + $0x158] sm:$0xff]
    %v108 = vld [vmem:[#allocation5 + $0x160] sm:$0xff]
    %v109 = vld [vmem:[#allocation5 + $0x168] sm:$0xff]
    %v110 = vld [vmem:[#allocation5 + $0x170] sm:$0xff]
    %v111 = vld [vmem:[#allocation5 + $0x178] sm:$0xff]
    %v112 = vld [vmem:[#allocation5 + $0x180] sm:$0xff]
    %v113 = vld [vmem:[#allocation5 + $0x188] sm:$0xff]
    %v114 = vld [vmem:[#allocation5 + $0x190] sm:$0xff]
    %v115 = vld [vmem:[#allocation5 + $0x198] sm:$0xff]
    %v116 = vld [vmem:[#allocation5 + $0x1a0] sm:$0xff]
    %v117 = vld [vmem:[#allocation5 + $0x1a8] sm:$0xff]
    %v118 = vld [vmem:[#allocation5 + $0x1b0] sm:$0xff]
    %v119 = vld [vmem:[#allocation5 + $0x1b8] sm:$0xff]
    %v120 = vld [vmem:[#allocation5 + $0x1c0] sm:$0xff]
    %v121 = vld [vmem:[#allocation5 + $0x1c8] sm:$0xff]
    %v122 = vld [vmem:[#allocation5 + $0x1d0] sm:$0xff]
    %v123 = vld [vmem:[#allocation5 + $0x1d8] sm:$0xff]
    %v124 = vld [vmem:[#allocation5 + $0x1e0] sm:$0xff]
    %v125 = vld [vmem:[#allocation5 + $0x1e8] sm:$0xff]
    %v126 = vld [vmem:[#allocation5 + $0x1f0] sm:$0xff]
    %v127 = vld [vmem:[#allocation5 + $0x1f8] sm:$0xff]
    %v128 = vld [vmem:[#allocation5 + $0x200] sm:$0xff]
    %v129 = vld [vmem:[#allocation5 + $0x208] sm:$0xff]
    %v130 = vld [vmem:[#allocation5 + $0x210] sm:$0xff]
    %v131 = vld [vmem:[#allocation5 + $0x218] sm:$0xff]
    %v132 = vld [vmem:[#allocation5 + $0x220] sm:$0xff]
    %v133 = vld [vmem:[#allocation5 + $0x228] sm:$0xff]
    %v134 = vld [vmem:[#allocation5 + $0x230] sm:$0xff]
    %v135 = vld [vmem:[#allocation5 + $0x238] sm:$0xff]
    %v136 = vld [vmem:[#allocation5 + $0x240] sm:$0xff]
    %v137 = vld [vmem:[#allocation5 + $0x248] sm:$0xff]
    %v138 = vld [vmem:[#allocation5 + $0x250] sm:$0xff]
    %v139 = vld [vmem:[#allocation5 + $0x258] sm:$0xff]
    %v140 = vld [vmem:[#allocation5 + $0x260] sm:$0xff]
    %v141 = vld [vmem:[#allocation5 + $0x268] sm:$0xff]
    %v142 = vld [vmem:[#allocation5 + $0x270] sm:$0xff]
    %v143 = vld [vmem:[#allocation5 + $0x278] sm:$0xff]
    %v144 = vld [vmem:[#allocation5 + $0x280] sm:$0xff]
    %v145 = vld [vmem:[#allocation5 + $0x288] sm:$0xff]
    %v146 = vld [vmem:[#allocation5 + $0x290] sm:$0xff]
    %v147 = vld [vmem:[#allocation5 + $0x298] sm:$0xff]
    %v148 = vld [vmem:[#allocation5 + $0x2a0] sm:$0xff]
    %v149 = vld [vmem:[#allocation5 + $0x2a8] sm:$0xff]
    %v150 = vld [vmem:[#allocation5 + $0x2b0] sm:$0xff]
    %v151 = vld [vmem:[#allocation5 + $0x2b8] sm:$0xff]
    %v152 = vld [vmem:[#allocation5 + $0x2c0] sm:$0xff]
    %v153 = vld [vmem:[#allocation5 + $0x2c8] sm:$0xff]
    %v154 = vld [vmem:[#allocation5 + $0x2d0] sm:$0xff]
    %v155 = vld [vmem:[#allocation5 + $0x2d8] sm:$0xff]
    %v156 = vld [vmem:[#allocation5 + $0x2e0] sm:$0xff]
    %v157 = vld [vmem:[#allocation5 + $0x2e8] sm:$0xff]
    %v158 = vld [vmem:[#allocation5 + $0x2f0] sm:$0xff]
    %v159 = vld [vmem:[#allocation5 + $0x2f8] sm:$0xff]
    %v160 = vld [vmem:[#allocation5 + $0x300] sm:$0xff]
    %v161 = vld [vmem:[#allocation5 + $0x308] sm:$0xff]
    %v162 = vld [vmem:[#allocation5 + $0x310] sm:$0xff]
    %v163 = vld [vmem:[#allocation5 + $0x318] sm:$0xff]
    %v164 = vld [vmem:[#allocation5 + $0x320] sm:$0xff]
    %v165 = vld [vmem:[#allocation5 + $0x328] sm:$0xff]
    %v166 = vld [vmem:[#allocation5 + $0x330] sm:$0xff]
    %v167 = vld [vmem:[#allocation5 + $0x338] sm:$0xff]
    %v168 = vld [vmem:[#allocation5 + $0x340] sm:$0xff]
    %v169 = vld [vmem:[#allocation5 + $0x348] sm:$0xff]
    %v170 = vld [vmem:[#allocation5 + $0x350] sm:$0xff]
    %v171 = vld [vmem:[#allocation5 + $0x358] sm:$0xff]
    %v172 = vld [vmem:[#allocation5 + $0x360] sm:$0xff]
    %v173 = vld [vmem:[#allocation5 + $0x368] sm:$0xff]
    %v174 = vld [vmem:[#allocation5 + $0x370] sm:$0xff]
    %v175 = vld [vmem:[#allocation5 + $0x378] sm:$0xff]
    %v176 = vld [vmem:[#allocation5 + $0x380] sm:$0xff]
    %v177 = vld [vmem:[#allocation5 + $0x388] sm:$0xff]
    %v178 = vld [vmem:[#allocation5 + $0x390] sm:$0xff]
    %v179 = vld [vmem:[#allocation5 + $0x398] sm:$0xff]
    %v180 = vld [vmem:[#allocation5 + $0x3a0] sm:$0xff]
    %v181 = vld [vmem:[#allocation5 + $0x3a8] sm:$0xff]
    %v182 = vld [vmem:[#allocation5 + $0x3b0] sm:$0xff]
    %v183 = vld [vmem:[#allocation5 + $0x3b8] sm:$0xff]
    %v184 = vld [vmem:[#allocation5 + $0x3c0] sm:$0xff]
    %v185 = vld [vmem:[#allocation5 + $0x3c8] sm:$0xff]
    %v186 = vld [vmem:[#allocation5 + $0x3d0] sm:$0xff]
    %v187 = vld [vmem:[#allocation5 + $0x3d8] sm:$0xff]
    %v188 = vld [vmem:[#allocation5 + $0x3e0] sm:$0xff]
    %v189 = vld [vmem:[#allocation5 + $0x3e8] sm:$0xff]
    %v190 = vld [vmem:[#allocation5 + $0x3f0] sm:$0xff]
    %v191 = vld [vmem:[#allocation5 + $0x3f8] sm:$0xff]
    %v192 = vld [vmem:[#allocation5 + $0x400] sm:$0xff]
    %v193 = vld [vmem:[#allocation5 + $0x408] sm:$0xff]
    %v194 = vld [vmem:[#allocation5 + $0x410] sm:$0xff]
    %v195 = vld [vmem:[#allocation5 + $0x418] sm:$0xff]
    %v196 = vld [vmem:[#allocation5 + $0x420] sm:$0xff]
    %v197 = vld [vmem:[#allocation5 + $0x428] sm:$0xff]
    %v198 = vld [vmem:[#allocation5 + $0x430] sm:$0xff]
    %v199 = vld [vmem:[#allocation5 + $0x438] sm:$0xff]
    %v200 = vld [vmem:[#allocation5 + $0x440] sm:$0xff]
    %v201 = vld [vmem:[#allocation5 + $0x448] sm:$0xff]
    %v202 = vld [vmem:[#allocation5 + $0x450] sm:$0xff]
    %v203 = vld [vmem:[#allocation5 + $0x458] sm:$0xff]
    %v204 = vld [vmem:[#allocation5 + $0x460] sm:$0xff]
    %v205 = vld [vmem:[#allocation5 + $0x468] sm:$0xff]
    %v206 = vld [vmem:[#allocation5 + $0x470] sm:$0xff]
    %v207 = vld [vmem:[#allocation5 + $0x478] sm:$0xff]
    %v208 = vld [vmem:[#allocation5 + $0x480] sm:$0xff]
    %v209 = vld [vmem:[#allocation5 + $0x488] sm:$0xff]
    %v210 = vld [vmem:[#allocation5 + $0x490] sm:$0xff]
    %v211 = vld [vmem:[#allocation5 + $0x498] sm:$0xff]
    %v212 = vld [vmem:[#allocation5 + $0x4a0] sm:$0xff]
    %v213 = vld [vmem:[#allocation5 + $0x4a8] sm:$0xff]
    %v214 = vld [vmem:[#allocation5 + $0x4b0] sm:$0xff]
    %v215 = vld [vmem:[#allocation5 + $0x4b8] sm:$0xff]
    %v216 = vld [vmem:[#allocation5 + $0x4c0] sm:$0xff]
    %v217 = vld [vmem:[#allocation5 + $0x4c8] sm:$0xff]
    %v218 = vld [vmem:[#allocation5 + $0x4d0] sm:$0xff]
    %v219 = vld [vmem:[#allocation5 + $0x4d8] sm:$0xff]
    %v220 = vld [vmem:[#allocation5 + $0x4e0] sm:$0xff]
    %v221 = vld [vmem:[#allocation5 + $0x4e8] sm:$0xff]
    %v222 = vld [vmem:[#allocation5 + $0x4f0] sm:$0xff]
    %v223 = vld [vmem:[#allocation5 + $0x4f8] sm:$0xff]
    %v224 = vld [vmem:[#allocation5 + $0x500] sm:$0xff]
    %v225 = vld [vmem:[#allocation5 + $0x508] sm:$0xff]
    %v226 = vld [vmem:[#allocation5 + $0x510] sm:$0xff]
    %v227 = vld [vmem:[#allocation5 + $0x518] sm:$0xff]
    %v228 = vld [vmem:[#allocation5 + $0x520] sm:$0xff]
    %v229 = vld [vmem:[#allocation5 + $0x528] sm:$0xff]
    %v230 = vld [vmem:[#allocation5 + $0x530] sm:$0xff]
    %v231 = vld [vmem:[#allocation5 + $0x538] sm:$0xff]
    %v232 = vld [vmem:[#allocation5 + $0x540] sm:$0xff]
    %v233 = vld [vmem:[#allocation5 + $0x548] sm:$0xff]
    %v234 = vld [vmem:[#allocation5 + $0x550] sm:$0xff]
    %v235 = vld [vmem:[#allocation5 + $0x558] sm:$0xff]
    %v236 = vld [vmem:[#allocation5 + $0x560] sm:$0xff]
    %v237 = vld [vmem:[#allocation5 + $0x568] sm:$0xff]
    %v238 = vld [vmem:[#allocation5 + $0x570] sm:$0xff]
    %v239 = vld [vmem:[#allocation5 + $0x578] sm:$0xff]
    %v240 = vld [vmem:[#allocation5 + $0x580] sm:$0xff]
    %v241 = vld [vmem:[#allocation5 + $0x588] sm:$0xff]
    %v242 = vld [vmem:[#allocation5 + $0x590] sm:$0xff]
    %v243 = vld [vmem:[#allocation5 + $0x598] sm:$0xff]
    %v244 = vld [vmem:[#allocation5 + $0x5a0] sm:$0xff]
    %v245 = vld [vmem:[#allocation5 + $0x5a8] sm:$0xff]
    %v246 = vld [vmem:[#allocation5 + $0x5b0] sm:$0xff]
    %v247 = vld [vmem:[#allocation5 + $0x5b8] sm:$0xff]
    %v248 = vld [vmem:[#allocation5 + $0x5c0] sm:$0xff]
    %v249 = vld [vmem:[#allocation5 + $0x5c8] sm:$0xff]
    %v250 = vld [vmem:[#allocation5 + $0x5d0] sm:$0xff]
    %v251 = vld [vmem:[#allocation5 + $0x5d8] sm:$0xff]
    %v252 = vld [vmem:[#allocation5 + $0x5e0] sm:$0xff]
    %v253 = vld [vmem:[#allocation5 + $0x5e8] sm:$0xff]
    %v254 = vld [vmem:[#allocation5 + $0x5f0] sm:$0xff]
    %v255 = vld [vmem:[#allocation5 + $0x5f8] sm:$0xff]
    %v256 = vld [vmem:[#allocation5 + $0x600] sm:$0xff]
    %v257 = vld [vmem:[#allocation5 + $0x608] sm:$0xff]
    %v258 = vld [vmem:[#allocation5 + $0x610] sm:$0xff]
    %v259 = vld [vmem:[#allocation5 + $0x618] sm:$0xff]
    %v260 = vld [vmem:[#allocation5 + $0x620] sm:$0xff]
    %v261 = vld [vmem:[#allocation5 + $0x628] sm:$0xff]
    %v262 = vld [vmem:[#allocation5 + $0x630] sm:$0xff]
    %v263 = vld [vmem:[#allocation5 + $0x638] sm:$0xff]
    %v264 = vld [vmem:[#allocation5 + $0x640] sm:$0xff]
    %v265 = vld [vmem:[#allocation5 + $0x648] sm:$0xff]
    %v266 = vld [vmem:[#allocation5 + $0x650] sm:$0xff]
    %v267 = vld [vmem:[#allocation5 + $0x658] sm:$0xff]
    %v268 = vld [vmem:[#allocation5 + $0x660] sm:$0xff]
    %v269 = vld [vmem:[#allocation5 + $0x668] sm:$0xff]
    %v270 = vld [vmem:[#allocation5 + $0x670] sm:$0xff]
    %v271 = vld [vmem:[#allocation5 + $0x678] sm:$0xff]
    %v272 = vld [vmem:[#allocation5 + $0x680] sm:$0xff]
    %v273 = vld [vmem:[#allocation5 + $0x688] sm:$0xff]
    %v274 = vld [vmem:[#allocation5 + $0x690] sm:$0xff]
    %v275 = vld [vmem:[#allocation5 + $0x698] sm:$0xff]
    %v276 = vld [vmem:[#allocation5 + $0x6a0] sm:$0xff]
    %v277 = vld [vmem:[#allocation5 + $0x6a8] sm:$0xff]
    %v278 = vld [vmem:[#allocation5 + $0x6b0] sm:$0xff]
    %v279 = vld [vmem:[#allocation5 + $0x6b8] sm:$0xff]
    %v280 = vld [vmem:[#allocation5 + $0x6c0] sm:$0xff]
    %v281 = vld [vmem:[#allocation5 + $0x6c8] sm:$0xff]
    %v282 = vld [vmem:[#allocation5 + $0x6d0] sm:$0xff]
    %v283 = vld [vmem:[#allocation5 + $0x6d8] sm:$0xff]
    %v284 = vld [vmem:[#allocation5 + $0x6e0] sm:$0xff]
    %v285 = vld [vmem:[#allocation5 + $0x6e8] sm:$0xff]
    %v286 = vld [vmem:[#allocation5 + $0x6f0] sm:$0xff]
    %v287 = vld [vmem:[#allocation5 + $0x6f8] sm:$0xff]
    %v288 = vld [vmem:[#allocation5 + $0x700] sm:$0xff]
    %v289 = vld [vmem:[#allocation5 + $0x708] sm:$0xff]
    %v290 = vld [vmem:[#allocation5 + $0x710] sm:$0xff]
    %v291 = vld [vmem:[#allocation5 + $0x718] sm:$0xff]
    %v292 = vld [vmem:[#allocation5 + $0x720] sm:$0xff]
    %v293 = vld [vmem:[#allocation5 + $0x728] sm:$0xff]
    %v294 = vld [vmem:[#allocation5 + $0x730] sm:$0xff]
    %v295 = vld [vmem:[#allocation5 + $0x738] sm:$0xff]
    %v296 = vld [vmem:[#allocation5 + $0x740] sm:$0xff]
    %v297 = vld [vmem:[#allocation5 + $0x748] sm:$0xff]
    %v298 = vld [vmem:[#allocation5 + $0x750] sm:$0xff]
    %v299 = vld [vmem:[#allocation5 + $0x758] sm:$0xff]
    %v300 = vld [vmem:[#allocation5 + $0x760] sm:$0xff]
    %v301 = vld [vmem:[#allocation5 + $0x768] sm:$0xff]
    %v302 = vld [vmem:[#allocation5 + $0x770] sm:$0xff]
    %v303 = vld [vmem:[#allocation5 + $0x778] sm:$0xff]
    %v304 = vld [vmem:[#allocation5 + $0x780] sm:$0xff]
    %v305 = vld [vmem:[#allocation5 + $0x788] sm:$0xff]
    %v306 = vld [vmem:[#allocation5 + $0x790] sm:$0xff]
    %v307 = vld [vmem:[#allocation5 + $0x798] sm:$0xff]
    %v308 = vld [vmem:[#allocation5 + $0x7a0] sm:$0xff]
    %v309 = vld [vmem:[#allocation5 + $0x7a8] sm:$0xff]
    %v310 = vld [vmem:[#allocation5 + $0x7b0] sm:$0xff]
    %v311 = vld [vmem:[#allocation5 + $0x7b8] sm:$0xff]
    %v312 = vld [vmem:[#allocation5 + $0x7c0] sm:$0xff]
    %v313 = vld [vmem:[#allocation5 + $0x7c8] sm:$0xff]
    %v314 = vld [vmem:[#allocation5 + $0x7d0] sm:$0xff]
    %v315 = vld [vmem:[#allocation5 + $0x7d8] sm:$0xff]
    %v316 = vld [vmem:[#allocation5 + $0x7e0] sm:$0xff]
    %v317 = vld [vmem:[#allocation5 + $0x7e8] sm:$0xff]
    %v318 = vld [vmem:[#allocation5 + $0x7f0] sm:$0xff]
    %v319 = vld [vmem:[#allocation5 + $0x7f8] sm:$0xff]
    %320 = vmatprep.subr.mxu0 %v125
    %321 = vmatpush1.msra.mxu0 %v124
    %322 = vmatprep.subr.mxu0 %v121
    %323 = vmatpush1.msra.mxu0 %v120
    %324 = vmatprep.subr.mxu0 %v117
    %325 = vmatpush1.msra.mxu0 %v116
    %326 = vmatprep.subr.mxu0 %v113
    %327 = vmatpush1.msra.mxu0 %v112
    %328 = vmatprep.subr.mxu0 %v109
    %329 = vmatpush1.msra.mxu0 %v108
    %330 = vmatprep.subr.mxu0 %v105
    %331 = vmatpush1.msra.mxu0 %v104
    %332 = vmatprep.subr.mxu0 %v101
    %333 = vmatpush1.msra.mxu0 %v100
    %334 = vmatprep.subr.mxu0 %v97
    %335 = vmatpush1.msra.mxu0 %v96
    %336 = vmatprep.subr.mxu0 %v93
    %337 = vmatpush1.msra.mxu0 %v92
    %338 = vmatprep.subr.mxu0 %v89
    %339 = vmatpush1.msra.mxu0 %v88
    %340 = vmatprep.subr.mxu0 %v85
    %341 = vmatpush1.msra.mxu0 %v84
    %342 = vmatprep.subr.mxu0 %v81
    %343 = vmatpush1.msra.mxu0 %v80
    %344 = vmatprep.subr.mxu0 %v77
    %345 = vmatpush1.msra.mxu0 %v76
    %346 = vmatprep.subr.mxu0 %v73
    %347 = vmatpush1.msra.mxu0 %v72
    %348 = vmatprep.subr.mxu0 %v69
    %349 = vmatpush1.msra.mxu0 %v68
    %350 = vmatprep.subr.mxu0 %v65
    %351 = vmatpush1.msra.mxu0 %v64
    %352 = vmatprep.subr.mxu0 %v189
    %353 = vmatpush2.msra.mxu0 %v188
    %354 = vmatprep.subr.mxu0 %v185
    %355 = vmatpush2.msra.mxu0 %v184
    %356 = vmatprep.subr.mxu0 %v181
    %357 = vmatpush2.msra.mxu0 %v180
    %358 = vmatprep.subr.mxu0 %v177
    %359 = vmatpush2.msra.mxu0 %v176
    %360 = vmatprep.subr.mxu0 %v173
    %361 = vmatpush2.msra.mxu0 %v172
    %362 = vmatprep.subr.mxu0 %v169
    %363 = vmatpush2.msra.mxu0 %v168
    %364 = vmatprep.subr.mxu0 %v165
    %365 = vmatpush2.msra.mxu0 %v164
    %366 = vmatprep.subr.mxu0 %v161
    %367 = vmatpush2.msra.mxu0 %v160
    %368 = vmatprep.subr.mxu0 %v157
    %369 = vmatpush2.msra.mxu0 %v156
    %370 = vmatprep.subr.mxu0 %v153
    %371 = vmatpush2.msra.mxu0 %v152
    %372 = vmatprep.subr.mxu0 %v149
    %373 = vmatpush2.msra.mxu0 %v148
    %374 = vmatprep.subr.mxu0 %v145
    %375 = vmatpush2.msra.mxu0 %v144
    %376 = vmatprep.subr.mxu0 %v141
    %377 = vmatpush2.msra.mxu0 %v140
    %378 = vmatprep.subr.mxu0 %v137
    %379 = vmatpush2.msra.mxu0 %v136
    %380 = vmatprep.subr.mxu0 %v133
    %381 = vmatpush2.msra.mxu0 %v132
    %382 = vmatprep.subr.mxu0 %v129
    %383 = vmatpush2.msra.mxu0 %v128
    %384 = vmatprep.mubr.f32.mxu0 %v57
    %385 = vmatmul.mubr.f32.gmra.mxu0 %v56
    %v386 = vpop.f32.mrf.mxu0
    %v387 = vadd.f32 0.0, %v386
    %v388 = vpop.f32.mrf.mxu0
    %v389 = vadd.f32 0.0, %v388
    %390 = vmatprep.mubr.f32.mxu0 %v61
    %391 = vmatmul.mubr.f32.gmra.mxu0 %v60
    %v392 = vpop.f32.mrf.mxu0
    %v393 = vadd.f32 0.0, %v392
    %v394 = vpop.f32.mrf.mxu0
    %v395 = vadd.f32 0.0, %v394
    %396 = vdwg.mxu0
    %397 = vmatprep.subr.mxu0 %v253
    %398 = vmatpush1.msra.mxu0 %v252
    %399 = vmatprep.subr.mxu0 %v249
    %400 = vmatpush1.msra.mxu0 %v248
    %401 = vmatprep.subr.mxu0 %v245
    %402 = vmatpush1.msra.mxu0 %v244
    %403 = vmatprep.subr.mxu0 %v241
    %404 = vmatpush1.msra.mxu0 %v240
    %405 = vmatprep.subr.mxu0 %v237
    %406 = vmatpush1.msra.mxu0 %v236
    %407 = vmatprep.subr.mxu0 %v233
    %408 = vmatpush1.msra.mxu0 %v232
    %409 = vmatprep.subr.mxu0 %v229
    %410 = vmatpush1.msra.mxu0 %v228
    %411 = vmatprep.subr.mxu0 %v225
    %412 = vmatpush1.msra.mxu0 %v224
    %413 = vmatprep.subr.mxu0 %v221
    %414 = vmatpush1.msra.mxu0 %v220
    %415 = vmatprep.subr.mxu0 %v217
    %416 = vmatpush1.msra.mxu0 %v216
    %417 = vmatprep.subr.mxu0 %v213
    %418 = vmatpush1.msra.mxu0 %v212
    %419 = vmatprep.subr.mxu0 %v209
    %420 = vmatpush1.msra.mxu0 %v208
    %421 = vmatprep.subr.mxu0 %v205
    %422 = vmatpush1.msra.mxu0 %v204
    %423 = vmatprep.subr.mxu0 %v201
    %424 = vmatpush1.msra.mxu0 %v200
    %425 = vmatprep.subr.mxu0 %v197
    %426 = vmatpush1.msra.mxu0 %v196
    %427 = vmatprep.subr.mxu0 %v193
    %428 = vmatpush1.msra.mxu0 %v192
    %429 = vmatprep.subr.mxu0 %v317
    %430 = vmatpush2.msra.mxu0 %v316
    %431 = vmatprep.subr.mxu0 %v313
    %432 = vmatpush2.msra.mxu0 %v312
    %433 = vmatprep.subr.mxu0 %v309
    %434 = vmatpush2.msra.mxu0 %v308
    %435 = vmatprep.subr.mxu0 %v305
    %436 = vmatpush2.msra.mxu0 %v304
    %437 = vmatprep.subr.mxu0 %v301
    %438 = vmatpush2.msra.mxu0 %v300
    %439 = vmatprep.subr.mxu0 %v297
    %440 = vmatpush2.msra.mxu0 %v296
    %441 = vmatprep.subr.mxu0 %v293
    %442 = vmatpush2.msra.mxu0 %v292
    %443 = vmatprep.subr.mxu0 %v289
    %444 = vmatpush2.msra.mxu0 %v288
    %445 = vmatprep.subr.mxu0 %v285
    %446 = vmatpush2.msra.mxu0 %v284
    %447 = vmatprep.subr.mxu0 %v281
    %448 = vmatpush2.msra.mxu0 %v280
    %449 = vmatprep.subr.mxu0 %v277
    %450 = vmatpush2.msra.mxu0 %v276
    %451 = vmatprep.subr.mxu0 %v273
    %452 = vmatpush2.msra.mxu0 %v272
    %453 = vmatprep.subr.mxu0 %v269
    %454 = vmatpush2.msra.mxu0 %v268
    %455 = vmatprep.subr.mxu0 %v265
    %456 = vmatpush2.msra.mxu0 %v264
    %457 = vmatprep.subr.mxu0 %v261
    %458 = vmatpush2.msra.mxu0 %v260
    %459 = vmatprep.subr.mxu0 %v257
    %460 = vmatpush2.msra.mxu0 %v256
    %461 = vmatprep.mubr.f32.mxu0 %v59
    %462 = vmatmul.mubr.f32.gmra.mxu0 %v58
    %v463 = vpop.f32.mrf.mxu0
    %v464 = vadd.f32 %v387, %v463
    %v465 = vpop.f32.mrf.mxu0
    %v466 = vadd.f32 %v389, %v465
    %467 = vmatprep.mubr.f32.mxu0 %v63
    %468 = vmatmul.mubr.f32.gmra.mxu0 %v62
    %v469 = vpop.f32.mrf.mxu0
    %v470 = vadd.f32 %v393, %v469
    %v471 = vpop.f32.mrf.mxu0
    %v472 = vadd.f32 %v395, %v471
    %473 = vdwg.mxu0
    %474 = vmatprep.subr.mxu0 %v127
    %475 = vmatpush1.msra.mxu0 %v126
    %476 = vmatprep.subr.mxu0 %v123
    %477 = vmatpush1.msra.mxu0 %v122
    %478 = vmatprep.subr.mxu0 %v119
    %479 = vmatpush1.msra.mxu0 %v118
    %480 = vmatprep.subr.mxu0 %v115
    %481 = vmatpush1.msra.mxu0 %v114
    %482 = vmatprep.subr.mxu0 %v111
    %483 = vmatpush1.msra.mxu0 %v110
    %484 = vmatprep.subr.mxu0 %v107
    %485 = vmatpush1.msra.mxu0 %v106
    %486 = vmatprep.subr.mxu0 %v103
    %487 = vmatpush1.msra.mxu0 %v102
    %488 = vmatprep.subr.mxu0 %v99
    %489 = vmatpush1.msra.mxu0 %v98
    %490 = vmatprep.subr.mxu0 %v95
    %491 = vmatpush1.msra.mxu0 %v94
    %492 = vmatprep.subr.mxu0 %v91
    %493 = vmatpush1.msra.mxu0 %v90
    %494 = vmatprep.subr.mxu0 %v87
    %495 = vmatpush1.msra.mxu0 %v86
    %496 = vmatprep.subr.mxu0 %v83
    %497 = vmatpush1.msra.mxu0 %v82
    %498 = vmatprep.subr.mxu0 %v79
    %499 = vmatpush1.msra.mxu0 %v78
    %500 = vmatprep.subr.mxu0 %v75
    %501 = vmatpush1.msra.mxu0 %v74
    %502 = vmatprep.subr.mxu0 %v71
    %503 = vmatpush1.msra.mxu0 %v70
    %504 = vmatprep.subr.mxu0 %v67
    %505 = vmatpush1.msra.mxu0 %v66
    %506 = vmatprep.subr.mxu0 %v191
    %507 = vmatpush2.msra.mxu0 %v190
    %508 = vmatprep.subr.mxu0 %v187
    %509 = vmatpush2.msra.mxu0 %v186
    %510 = vmatprep.subr.mxu0 %v183
    %511 = vmatpush2.msra.mxu0 %v182
    %512 = vmatprep.subr.mxu0 %v179
    %513 = vmatpush2.msra.mxu0 %v178
    %514 = vmatprep.subr.mxu0 %v175
    %515 = vmatpush2.msra.mxu0 %v174
    %516 = vmatprep.subr.mxu0 %v171
    %517 = vmatpush2.msra.mxu0 %v170
    %518 = vmatprep.subr.mxu0 %v167
    %519 = vmatpush2.msra.mxu0 %v166
    %520 = vmatprep.subr.mxu0 %v163
    %521 = vmatpush2.msra.mxu0 %v162
    %522 = vmatprep.subr.mxu0 %v159
    %523 = vmatpush2.msra.mxu0 %v158
    %524 = vmatprep.subr.mxu0 %v155
    %525 = vmatpush2.msra.mxu0 %v154
    %526 = vmatprep.subr.mxu0 %v151
    %527 = vmatpush2.msra.mxu0 %v150
    %528 = vmatprep.subr.mxu0 %v147
    %529 = vmatpush2.msra.mxu0 %v146
    %530 = vmatprep.subr.mxu0 %v143
    %531 = vmatpush2.msra.mxu0 %v142
    %532 = vmatprep.subr.mxu0 %v139
    %533 = vmatpush2.msra.mxu0 %v138
    %534 = vmatprep.subr.mxu0 %v135
    %535 = vmatpush2.msra.mxu0 %v134
    %536 = vmatprep.subr.mxu0 %v131
    %537 = vmatpush2.msra.mxu0 %v130
    %538 = vmatprep.mubr.f32.mxu0 %v57
    %539 = vmatmul.mubr.f32.gmra.mxu0 %v56
    %v540 = vpop.f32.mrf.mxu0
    %v541 = vadd.f32 0.0, %v540
    %v542 = vpop.f32.mrf.mxu0
    %v543 = vadd.f32 0.0, %v542
    %544 = vmatprep.mubr.f32.mxu0 %v61
    %545 = vmatmul.mubr.f32.gmra.mxu0 %v60
    %v546 = vpop.f32.mrf.mxu0
    %v547 = vadd.f32 0.0, %v546
    %v548 = vpop.f32.mrf.mxu0
    %v549 = vadd.f32 0.0, %v548
    %550 = vdwg.mxu0
    %551 = vmatprep.subr.mxu0 %v255
    %552 = vmatpush1.msra.mxu0 %v254
    %553 = vmatprep.subr.mxu0 %v251
    %554 = vmatpush1.msra.mxu0 %v250
    %555 = vmatprep.subr.mxu0 %v247
    %556 = vmatpush1.msra.mxu0 %v246
    %557 = vmatprep.subr.mxu0 %v243
    %558 = vmatpush1.msra.mxu0 %v242
    %559 = vmatprep.subr.mxu0 %v239
    %560 = vmatpush1.msra.mxu0 %v238
    %561 = vmatprep.subr.mxu0 %v235
    %562 = vmatpush1.msra.mxu0 %v234
    %563 = vmatprep.subr.mxu0 %v231
    %564 = vmatpush1.msra.mxu0 %v230
    %565 = vmatprep.subr.mxu0 %v227
    %566 = vmatpush1.msra.mxu0 %v226
    %567 = vmatprep.subr.mxu0 %v223
    %568 = vmatpush1.msra.mxu0 %v222
    %569 = vmatprep.subr.mxu0 %v219
    %570 = vmatpush1.msra.mxu0 %v218
    %571 = vmatprep.subr.mxu0 %v215
    %572 = vmatpush1.msra.mxu0 %v214
    %573 = vmatprep.subr.mxu0 %v211
    %574 = vmatpush1.msra.mxu0 %v210
    %575 = vmatprep.subr.mxu0 %v207
    %576 = vmatpush1.msra.mxu0 %v206
    %577 = vmatprep.subr.mxu0 %v203
    %578 = vmatpush1.msra.mxu0 %v202
    %579 = vmatprep.subr.mxu0 %v199
    %580 = vmatpush1.msra.mxu0 %v198
    %581 = vmatprep.subr.mxu0 %v195
    %582 = vmatpush1.msra.mxu0 %v194
    %583 = vmatprep.subr.mxu0 %v319
    %584 = vmatpush2.msra.mxu0 %v318
    %585 = vmatprep.subr.mxu0 %v315
    %586 = vmatpush2.msra.mxu0 %v314
    %587 = vmatprep.subr.mxu0 %v311
    %588 = vmatpush2.msra.mxu0 %v310
    %589 = vmatprep.subr.mxu0 %v307
    %590 = vmatpush2.msra.mxu0 %v306
    %591 = vmatprep.subr.mxu0 %v303
    %592 = vmatpush2.msra.mxu0 %v302
    %593 = vmatprep.subr.mxu0 %v299
    %594 = vmatpush2.msra.mxu0 %v298
    %595 = vmatprep.subr.mxu0 %v295
    %596 = vmatpush2.msra.mxu0 %v294
    %597 = vmatprep.subr.mxu0 %v291
    %598 = vmatpush2.msra.mxu0 %v290
    %599 = vmatprep.subr.mxu0 %v287
    %600 = vmatpush2.msra.mxu0 %v286
    %601 = vmatprep.subr.mxu0 %v283
    %602 = vmatpush2.msra.mxu0 %v282
    %603 = vmatprep.subr.mxu0 %v279
    %604 = vmatpush2.msra.mxu0 %v278
    %605 = vmatprep.subr.mxu0 %v275
    %606 = vmatpush2.msra.mxu0 %v274
    %607 = vmatprep.subr.mxu0 %v271
    %608 = vmatpush2.msra.mxu0 %v270
    %609 = vmatprep.subr.mxu0 %v267
    %610 = vmatpush2.msra.mxu0 %v266
    %611 = vmatprep.subr.mxu0 %v263
    %612 = vmatpush2.msra.mxu0 %v262
    %613 = vmatprep.subr.mxu0 %v259
    %614 = vmatpush2.msra.mxu0 %v258
    %615 = vmatprep.mubr.f32.mxu0 %v59
    %616 = vmatmul.mubr.f32.gmra.mxu0 %v58
    %v617 = vpop.f32.mrf.mxu0
    %v618 = vadd.f32 %v541, %v617
    %v619 = vpop.f32.mrf.mxu0
    %v620 = vadd.f32 %v543, %v619
    %621 = vmatprep.mubr.f32.mxu0 %v63
    %622 = vmatmul.mubr.f32.gmra.mxu0 %v62
    %v623 = vpop.f32.mrf.mxu0
    %v624 = vadd.f32 %v547, %v623
    %v625 = vpop.f32.mrf.mxu0
    %v626 = vadd.f32 %v549, %v625
    %627 = vdwg.mxu0
    %v628 = vmul.f32 %v464, %v464
    %v629 = vmul.f32 %v466, %v466
    %v630 = vmul.f32 %v470, %v470
    %v631 = vmul.f32 %v472, %v472
    %v632 = vmul.f32 %v618, %v618
    %v633 = vmul.f32 %v620, %v620
    %v634 = vmul.f32 %v624, %v624
    %v635 = vmul.f32 %v626, %v626
    %v636 = vadd.f32 %v628, %v632
    %v637 = vadd.f32 %v629, %v633
    %v638 = vadd.f32 %v630, %v634
    %v639 = vadd.f32 %v631, %v635
    %v640 = vld [vmem:[#allocation7] sm:$0xff]
    %v641 = vld [vmem:[#allocation7 + $0x8] sm:$0xff]
    %v642 = vld [vmem:[#allocation7 + $0x10] sm:$0xff]
    %v643 = vld [vmem:[#allocation7 + $0x18] sm:$0xff]
    %v644 = vld [vmem:[#allocation7 + $0x20] sm:$0xff]
    %v645 = vld [vmem:[#allocation7 + $0x28] sm:$0xff]
    %v646 = vld [vmem:[#allocation7 + $0x30] sm:$0xff]
    %v647 = vld [vmem:[#allocation7 + $0x38] sm:$0xff]
    %v648 = vld [vmem:[#allocation7 + $0x40] sm:$0xff]
    %v649 = vld [vmem:[#allocation7 + $0x48] sm:$0xff]
    %v650 = vld [vmem:[#allocation7 + $0x50] sm:$0xff]
    %v651 = vld [vmem:[#allocation7 + $0x58] sm:$0xff]
    %v652 = vld [vmem:[#allocation7 + $0x60] sm:$0xff]
    %v653 = vld [vmem:[#allocation7 + $0x68] sm:$0xff]
    %v654 = vld [vmem:[#allocation7 + $0x70] sm:$0xff]
    %v655 = vld [vmem:[#allocation7 + $0x78] sm:$0xff]
    %v656 = vld [vmem:[#allocation7 + $0x80] sm:$0xff]
    %v657 = vld [vmem:[#allocation7 + $0x88] sm:$0xff]
    %v658 = vld [vmem:[#allocation7 + $0x90] sm:$0xff]
    %v659 = vld [vmem:[#allocation7 + $0x98] sm:$0xff]
    %v660 = vld [vmem:[#allocation7 + $0xa0] sm:$0xff]
    %v661 = vld [vmem:[#allocation7 + $0xa8] sm:$0xff]
    %v662 = vld [vmem:[#allocation7 + $0xb0] sm:$0xff]
    %v663 = vld [vmem:[#allocation7 + $0xb8] sm:$0xff]
    %v664 = vld [vmem:[#allocation7 + $0xc0] sm:$0xff]
    %v665 = vld [vmem:[#allocation7 + $0xc8] sm:$0xff]
    %v666 = vld [vmem:[#allocation7 + $0xd0] sm:$0xff]
    %v667 = vld [vmem:[#allocation7 + $0xd8] sm:$0xff]
    %v668 = vld [vmem:[#allocation7 + $0xe0] sm:$0xff]
    %v669 = vld [vmem:[#allocation7 + $0xe8] sm:$0xff]
    %v670 = vld [vmem:[#allocation7 + $0xf0] sm:$0xff]
    %v671 = vld [vmem:[#allocation7 + $0xf8] sm:$0xff]
    %v672 = vld [vmem:[#allocation7 + $0x100] sm:$0xff]
    %v673 = vld [vmem:[#allocation7 + $0x108] sm:$0xff]
    %v674 = vld [vmem:[#allocation7 + $0x110] sm:$0xff]
    %v675 = vld [vmem:[#allocation7 + $0x118] sm:$0xff]
    %v676 = vld [vmem:[#allocation7 + $0x120] sm:$0xff]
    %v677 = vld [vmem:[#allocation7 + $0x128] sm:$0xff]
    %v678 = vld [vmem:[#allocation7 + $0x130] sm:$0xff]
    %v679 = vld [vmem:[#allocation7 + $0x138] sm:$0xff]
    %v680 = vld [vmem:[#allocation7 + $0x140] sm:$0xff]
    %v681 = vld [vmem:[#allocation7 + $0x148] sm:$0xff]
    %v682 = vld [vmem:[#allocation7 + $0x150] sm:$0xff]
    %v683 = vld [vmem:[#allocation7 + $0x158] sm:$0xff]
    %v684 = vld [vmem:[#allocation7 + $0x160] sm:$0xff]
    %v685 = vld [vmem:[#allocation7 + $0x168] sm:$0xff]
    %v686 = vld [vmem:[#allocation7 + $0x170] sm:$0xff]
    %v687 = vld [vmem:[#allocation7 + $0x178] sm:$0xff]
    %v688 = vld [vmem:[#allocation7 + $0x180] sm:$0xff]
    %v689 = vld [vmem:[#allocation7 + $0x188] sm:$0xff]
    %v690 = vld [vmem:[#allocation7 + $0x190] sm:$0xff]
    %v691 = vld [vmem:[#allocation7 + $0x198] sm:$0xff]
    %v692 = vld [vmem:[#allocation7 + $0x1a0] sm:$0xff]
    %v693 = vld [vmem:[#allocation7 + $0x1a8] sm:$0xff]
    %v694 = vld [vmem:[#allocation7 + $0x1b0] sm:$0xff]
    %v695 = vld [vmem:[#allocation7 + $0x1b8] sm:$0xff]
    %v696 = vld [vmem:[#allocation7 + $0x1c0] sm:$0xff]
    %v697 = vld [vmem:[#allocation7 + $0x1c8] sm:$0xff]
    %v698 = vld [vmem:[#allocation7 + $0x1d0] sm:$0xff]
    %v699 = vld [vmem:[#allocation7 + $0x1d8] sm:$0xff]
    %v700 = vld [vmem:[#allocation7 + $0x1e0] sm:$0xff]
    %v701 = vld [vmem:[#allocation7 + $0x1e8] sm:$0xff]
    %v702 = vld [vmem:[#allocation7 + $0x1f0] sm:$0xff]
    %v703 = vld [vmem:[#allocation7 + $0x1f8] sm:$0xff]
    %v704 = vld [vmem:[#allocation7 + $0x200] sm:$0xff]
    %v705 = vld [vmem:[#allocation7 + $0x208] sm:$0xff]
    %v706 = vld [vmem:[#allocation7 + $0x210] sm:$0xff]
    %v707 = vld [vmem:[#allocation7 + $0x218] sm:$0xff]
    %v708 = vld [vmem:[#allocation7 + $0x220] sm:$0xff]
    %v709 = vld [vmem:[#allocation7 + $0x228] sm:$0xff]
    %v710 = vld [vmem:[#allocation7 + $0x230] sm:$0xff]
    %v711 = vld [vmem:[#allocation7 + $0x238] sm:$0xff]
    %v712 = vld [vmem:[#allocation7 + $0x240] sm:$0xff]
    %v713 = vld [vmem:[#allocation7 + $0x248] sm:$0xff]
    %v714 = vld [vmem:[#allocation7 + $0x250] sm:$0xff]
    %v715 = vld [vmem:[#allocation7 + $0x258] sm:$0xff]
    %v716 = vld [vmem:[#allocation7 + $0x260] sm:$0xff]
    %v717 = vld [vmem:[#allocation7 + $0x268] sm:$0xff]
    %v718 = vld [vmem:[#allocation7 + $0x270] sm:$0xff]
    %v719 = vld [vmem:[#allocation7 + $0x278] sm:$0xff]
    %v720 = vld [vmem:[#allocation7 + $0x280] sm:$0xff]
    %v721 = vld [vmem:[#allocation7 + $0x288] sm:$0xff]
    %v722 = vld [vmem:[#allocation7 + $0x290] sm:$0xff]
    %v723 = vld [vmem:[#allocation7 + $0x298] sm:$0xff]
    %v724 = vld [vmem:[#allocation7 + $0x2a0] sm:$0xff]
    %v725 = vld [vmem:[#allocation7 + $0x2a8] sm:$0xff]
    %v726 = vld [vmem:[#allocation7 + $0x2b0] sm:$0xff]
    %v727 = vld [vmem:[#allocation7 + $0x2b8] sm:$0xff]
    %v728 = vld [vmem:[#allocation7 + $0x2c0] sm:$0xff]
    %v729 = vld [vmem:[#allocation7 + $0x2c8] sm:$0xff]
    %v730 = vld [vmem:[#allocation7 + $0x2d0] sm:$0xff]
    %v731 = vld [vmem:[#allocation7 + $0x2d8] sm:$0xff]
    %v732 = vld [vmem:[#allocation7 + $0x2e0] sm:$0xff]
    %v733 = vld [vmem:[#allocation7 + $0x2e8] sm:$0xff]
    %v734 = vld [vmem:[#allocation7 + $0x2f0] sm:$0xff]
    %v735 = vld [vmem:[#allocation7 + $0x2f8] sm:$0xff]
    %736 = vmatprep.subr.mxu0 %v686
    %737 = vmatpush1.msra.mxu0 %v685
    %738 = vmatprep.subr.mxu0 %v683
    %739 = vmatpush1.msra.mxu0 %v682
    %740 = vmatprep.subr.mxu0 %v680
    %741 = vmatpush1.msra.mxu0 %v679
    %742 = vmatprep.subr.mxu0 %v677
    %743 = vmatpush1.msra.mxu0 %v676
    %744 = vmatprep.subr.mxu0 %v674
    %745 = vmatpush1.msra.mxu0 %v673
    %746 = vmatprep.subr.mxu0 %v671
    %747 = vmatpush1.msra.mxu0 %v670
    %748 = vmatprep.subr.mxu0 %v668
    %749 = vmatpush1.msra.mxu0 %v667
    %750 = vmatprep.subr.mxu0 %v665
    %751 = vmatpush1.msra.mxu0 %v664
    %752 = vmatprep.subr.mxu0 %v662
    %753 = vmatpush1.msra.mxu0 %v661
    %754 = vmatprep.subr.mxu0 %v659
    %755 = vmatpush1.msra.mxu0 %v658
    %756 = vmatprep.subr.mxu0 %v656
    %757 = vmatpush1.msra.mxu0 %v655
    %758 = vmatprep.subr.mxu0 %v653
    %759 = vmatpush1.msra.mxu0 %v652
    %760 = vmatprep.subr.mxu0 %v650
    %761 = vmatpush1.msra.mxu0 %v649
    %762 = vmatprep.subr.mxu0 %v647
    %763 = vmatpush1.msra.mxu0 %v646
    %764 = vmatprep.subr.mxu0 %v644
    %765 = vmatpush1.msra.mxu0 %v643
    %766 = vmatprep.subr.mxu0 %v641
    %767 = vmatpush1.msra.mxu0 %v640
    %768 = vmatprep.subr.mxu0 %v734
    %769 = vmatpush2.msra.mxu0 %v733
    %770 = vmatprep.subr.mxu0 %v731
    %771 = vmatpush2.msra.mxu0 %v730
    %772 = vmatprep.subr.mxu0 %v728
    %773 = vmatpush2.msra.mxu0 %v727
    %774 = vmatprep.subr.mxu0 %v725
    %775 = vmatpush2.msra.mxu0 %v724
    %776 = vmatprep.subr.mxu0 %v722
    %777 = vmatpush2.msra.mxu0 %v721
    %778 = vmatprep.subr.mxu0 %v719
    %779 = vmatpush2.msra.mxu0 %v718
    %780 = vmatprep.subr.mxu0 %v716
    %781 = vmatpush2.msra.mxu0 %v715
    %782 = vmatprep.subr.mxu0 %v713
    %783 = vmatpush2.msra.mxu0 %v712
    %784 = vmatprep.subr.mxu0 %v710
    %785 = vmatpush2.msra.mxu0 %v709
    %786 = vmatprep.subr.mxu0 %v707
    %787 = vmatpush2.msra.mxu0 %v706
    %788 = vmatprep.subr.mxu0 %v704
    %789 = vmatpush2.msra.mxu0 %v703
    %790 = vmatprep.subr.mxu0 %v701
    %791 = vmatpush2.msra.mxu0 %v700
    %792 = vmatprep.subr.mxu0 %v698
    %793 = vmatpush2.msra.mxu0 %v697
    %794 = vmatprep.subr.mxu0 %v695
    %795 = vmatpush2.msra.mxu0 %v694
    %796 = vmatprep.subr.mxu0 %v692
    %797 = vmatpush2.msra.mxu0 %v691
    %798 = vmatprep.subr.mxu0 %v689
    %799 = vmatpush2.msra.mxu0 %v688
    %800 = vmatprep.mubr.f32.mxu0 %v637
    %801 = vmatmul.mubr.f32.gmra.mxu0 %v636
    %v802 = vpop.f32.mrf.mxu0
    %v803 = vadd.f32 0.0, %v802
    %v804 = vpop.f32.mrf.mxu0
    %v805 = vadd.f32 0.0, %v804
    %806 = vmatprep.mubr.f32.mxu0 %v639
    %807 = vmatmul.mubr.f32.gmra.mxu0 %v638
    %v808 = vpop.f32.mrf.mxu0
    %v809 = vadd.f32 0.0, %v808
    %v810 = vpop.f32.mrf.mxu0
    %v811 = vadd.f32 0.0, %v810
    %812 = vdwg.mxu0
    %813 = vmatprep.subr.mxu0 0.0
    %814 = vmatpush1.msra.mxu0 %v687
    %815 = vmatprep.subr.mxu0 0.0
    %816 = vmatpush1.msra.mxu0 %v684
    %817 = vmatprep.subr.mxu0 0.0
    %818 = vmatpush1.msra.mxu0 %v681
    %819 = vmatprep.subr.mxu0 0.0
    %820 = vmatpush1.msra.mxu0 %v678
    %821 = vmatprep.subr.mxu0 0.0
    %822 = vmatpush1.msra.mxu0 %v675
    %823 = vmatprep.subr.mxu0 0.0
    %824 = vmatpush1.msra.mxu0 %v672
    %825 = vmatprep.subr.mxu0 0.0
    %826 = vmatpush1.msra.mxu0 %v669
    %827 = vmatprep.subr.mxu0 0.0
    %828 = vmatpush1.msra.mxu0 %v666
    %829 = vmatprep.subr.mxu0 0.0
    %830 = vmatpush1.msra.mxu0 %v663
    %831 = vmatprep.subr.mxu0 0.0
    %832 = vmatpush1.msra.mxu0 %v660
    %833 = vmatprep.subr.mxu0 0.0
    %834 = vmatpush1.msra.mxu0 %v657
    %835 = vmatprep.subr.mxu0 0.0
    %836 = vmatpush1.msra.mxu0 %v654
    %837 = vmatprep.subr.mxu0 0.0
    %838 = vmatpush1.msra.mxu0 %v651
    %839 = vmatprep.subr.mxu0 0.0
    %840 = vmatpush1.msra.mxu0 %v648
    %841 = vmatprep.subr.mxu0 0.0
    %842 = vmatpush1.msra.mxu0 %v645
    %843 = vmatprep.subr.mxu0 0.0
    %844 = vmatpush1.msra.mxu0 %v642
    %845 = vmatprep.subr.mxu0 0.0
    %846 = vmatpush2.msra.mxu0 %v735
    %847 = vmatprep.subr.mxu0 0.0
    %848 = vmatpush2.msra.mxu0 %v732
    %849 = vmatprep.subr.mxu0 0.0
    %850 = vmatpush2.msra.mxu0 %v729
    %851 = vmatprep.subr.mxu0 0.0
    %852 = vmatpush2.msra.mxu0 %v726
    %853 = vmatprep.subr.mxu0 0.0
    %854 = vmatpush2.msra.mxu0 %v723
    %855 = vmatprep.subr.mxu0 0.0
    %856 = vmatpush2.msra.mxu0 %v720
    %857 = vmatprep.subr.mxu0 0.0
    %858 = vmatpush2.msra.mxu0 %v717
    %859 = vmatprep.subr.mxu0 0.0
    %860 = vmatpush2.msra.mxu0 %v714
    %861 = vmatprep.subr.mxu0 0.0
    %862 = vmatpush2.msra.mxu0 %v711
    %863 = vmatprep.subr.mxu0 0.0
    %864 = vmatpush2.msra.mxu0 %v708
    %865 = vmatprep.subr.mxu0 0.0
    %866 = vmatpush2.msra.mxu0 %v705
    %867 = vmatprep.subr.mxu0 0.0
    %868 = vmatpush2.msra.mxu0 %v702
    %869 = vmatprep.subr.mxu0 0.0
    %870 = vmatpush2.msra.mxu0 %v699
    %871 = vmatprep.subr.mxu0 0.0
    %872 = vmatpush2.msra.mxu0 %v696
    %873 = vmatprep.subr.mxu0 0.0
    %874 = vmatpush2.msra.mxu0 %v693
    %875 = vmatprep.subr.mxu0 0.0
    %876 = vmatpush2.msra.mxu0 %v690
    %877 = vmatprep.mubr.f32.mxu0 %v637
    %878 = vmatmul.mubr.f32.gmra.mxu0 %v636
    %v879 = vpop.f32.mrf.mxu0
    %v880 = vadd.f32 0.0, %v879
    %v881 = vpop.f32.mrf.mxu0
    %882 = vmatprep.mubr.f32.mxu0 %v639
    %883 = vmatmul.mubr.f32.gmra.mxu0 %v638
    %v884 = vpop.f32.mrf.mxu0
    %v885 = vadd.f32 0.0, %v884
    %v886 = vpop.f32.mrf.mxu0
    %887 = vdwg.mxu0
    %v888 = vmax.f32 %v803, 1e-10
    %v889 = vmax.f32 %v805, 1e-10
    %v890 = vmax.f32 %v880, 1e-10
    %v891 = vmax.f32 %v809, 1e-10
    %v892 = vmax.f32 %v811, 1e-10
    %v893 = vmax.f32 %v885, 1e-10
    %v894 = vlog2.pop %v888
    %v895 = vmul.f32 %v894, 0.6931472
    %v896 = vlog2.pop %v889
    %v897 = vmul.f32 %v896, 0.6931472
    %v898 = vlog2.pop %v890
    %v899 = vmul.f32 %v898, 0.6931472
    %v900 = vlog2.pop %v891
    %v901 = vmul.f32 %v900, 0.6931472
    %v902 = vlog2.pop %v892
    %v903 = vmul.f32 %v902, 0.6931472
    %v904 = vlog2.pop %v893
    %v905 = vmul.f32 %v904, 0.6931472
    %v906 = vmul.f32 %v895, 0.4342945
    %v907 = vmul.f32 %v897, 0.4342945
    %v908 = vmul.f32 %v899, 0.4342945
    %v909 = vmul.f32 %v901, 0.4342945
    %v910 = vmul.f32 %v903, 0.4342945
    %v911 = vmul.f32 %v905, 0.4342945
    %v912 = vmul.f32 %v906, 10.0
    %v913 = vmul.f32 %v907, 10.0
    %v914 = vmul.f32 %v908, 10.0
    %v915 = vmul.f32 %v909, 10.0
    %v916 = vmul.f32 %v910, 10.0
    %v917 = vmul.f32 %v911, 10.0
    %918 = vst [vmem:[#allocation8] sm:$0xff] %v912
    %919 = vst [vmem:[#allocation8 + $0x8] sm:$0xff] %v913
    %920 = vst [vmem:[#allocation8 + $0x10] sm:$0xff] %v914
    %921 = vst [vmem:[#allocation8 + $0x18] sm:$0xff] %v915
    %922 = vst [vmem:[#allocation8 + $0x20] sm:$0xff] %v916
    %923 = vst [vmem:[#allocation8 + $0x28] sm:$0xff] %v917
    // Predicated region
    $region26: #{tpu_custom_call.1} parent=1 // pred_check
      _
    $region27: #{tpu_custom_call.1} parent=1 // pred_check_branch
      %925 = sbr.rel (0) target = $region29
    $region28: #{tpu_custom_call.1} parent=1 // pred_region
      %s927 = ssub.s32 768, 768
      %928 = vsyncadd [#allocation4], %s927
      %s929 = sshll.u32 [#allocation8], 4
      %s930 = int_to_ptr.vmem [resolvable:$true] %s929
      %935 = dma.vmem_to_hbm [thread:$0]  %s930, 768, %s3, [#allocation4], 384, 384, 24
    $region29: #{tpu_custom_call.1} parent=1 // pred_fallthru
      _
    // Predicated region
    $region30: #{tpu_custom_call.1} parent=1 // pred_check
      _
    $region31: #{tpu_custom_call.1} parent=1 // pred_check_branch
      %937 = sbr.rel (0) target = $region33
    $region32: #{tpu_custom_call.1} parent=1 // pred_region
      %938 = dma.done [#allocation4], 768
    $region33: #{tpu_custom_call.1} parent=1 // pred_fallthru
      _
    %939 = vsyncpa [#allocation3], 1
    %940 = vsyncpa [#allocation6], 1
    %941 = vsyncpa [#allocation4], 1

</llo_original>
